<compile_context>
chip_gen: v7x
topology: tpu7x:2x2x1
jax: 0.10.0
libtpu: 0.0.40
codegen_flags: <defaults>
</compile_context>

<pallas_src>
import math
import functools

import jax
import jax.numpy as jnp
from jax import lax
from jax.experimental import pallas as pl
from jax.experimental.pallas import tpu as pltpu  # noqa: F401  (kept for TPU backend)

SQRT_2_OVER_PI = math.sqrt(2.0 / math.pi)
LN_EPS = 1e-5
NEG_BIG = -1e30


def _gelu_tanh(x):
    # 0.5 * x * (1 + tanh(sqrt(2/pi) * (x + 0.044715 * x^3)))  -- as in the module
    return 0.5 * x * (1.0 + jnp.tanh(SQRT_2_OVER_PI * (x + 0.044715 * (x ** 3))))


def gpt2_block_kernel(
    x_ref,               # (B*S, D)    f32
    ln_g_ref, ln_b_ref,  # (1, D)      f32
    w_qkv_ref,           # (D, 3*F)    bf16   columns = [K_all | V_all | Q_all]
    b_qkv_ref,           # (1, 3*F)    f32
    w_out_ref,           # (F, D)      bf16
    b_out_ref,           # (1, D)      f32
    w1_ref, b1_ref,      # (D, H) bf16, (1, H) f32
    w2_ref, b2_ref,      # (H, D) bf16, (1, D) f32
    bias_ref,            # (B*S, B*S)  f32    block-diagonal + causal additive bias
    out_ref,             # (B*S, D)    f32
    kv_ref,              # (B*S, 2*F)  f32    [K_all | V_all] rows
    *, num_heads, hidden_sz,
):
    NH, H = num_heads, hidden_sz
    F = NH * H

    x = x_ref[...]                                     # (B*S, D) f32

    # ---- PE_layer_norm (eps=1e-5, biased variance, affine; f32) ----
    mean = jnp.mean(x, axis=-1, keepdims=True)
    var = jnp.mean((x - mean) ** 2, axis=-1, keepdims=True)
    x_ln = (x - mean) * lax.rsqrt(var + LN_EPS) * ln_g_ref[0] + ln_b_ref[0]

    # ---- fused K|V|Q for all heads: one wide MXU matmul (bf16 in, f32 acc) ----
    qkv = jnp.dot(x_ln.astype(jnp.bfloat16), w_qkv_ref[...],
                  preferred_element_type=jnp.float32) + b_qkv_ref[0]   # (B*S, 3F)

    # kv cache: single lane-aligned 128-wide f32 store (K|V slab at lanes 0..2F-1)
    kv_ref[...] = qkv[:, :2 * F]

    # single bf16 pack; every MXU operand below is a lane slice of this copy
    qkv_bf = qkv.astype(jnp.bfloat16)
    bias = bias_ref[...]

    # ---- attention over flat (B*S) rows; bias hides cross-batch / future keys.
    # No per-head score scaling (faithful to the reference module).
    head_outs = []
    for h in range(NH):                                # tiny static unroll (NH=2)
        kh = qkv_bf[:, h * H:(h + 1) * H]              # (B*S, H) bf16
        vh = qkv_bf[:, F + h * H:F + (h + 1) * H]
        qh = qkv_bf[:, 2 * F + h * H:2 * F + (h + 1) * H]

        s = lax.dot_general(qh, kh, (((1,), (1,)), ((), ())),
                            preferred_element_type=jnp.float32)       # (B*S, B*S)
        s = s + bias
        s = s - jnp.max(s, axis=-1, keepdims=True)
        p = jnp.exp(s)                                 # cross-batch/future -> exactly 0
        p = p * pl.reciprocal(jnp.sum(p, axis=-1, keepdims=True), approx=True)
        head_outs.append(jnp.dot(p.astype(jnp.bfloat16), vh,
                                 preferred_element_type=jnp.float32))  # (B*S, H)

    # concat-of-heads + single output projection
    concat = jnp.concatenate(head_outs, axis=-1)       # (B*S, F) f32
    attn = jnp.dot(concat.astype(jnp.bfloat16), w_out_ref[...],
                   preferred_element_type=jnp.float32) + b_out_ref[0]  # (B*S, D)

    # ---- residual 1, MLP (gelu tanh approx in f32), residual 2 ----
    x1 = attn + x
    h1 = jnp.dot(x1.astype(jnp.bfloat16), w1_ref[...],
                 preferred_element_type=jnp.float32) + b1_ref[0]
    g = _gelu_tanh(h1)
    out_ref[...] = jnp.dot(g.astype(jnp.bfloat16), w2_ref[...],
                           preferred_element_type=jnp.float32) + b2_ref[0] + x1


def prepare_gpt2_block_params(params, *, batch, seq):
    """One-time preprocessing (hoisted out of the per-call hot path):
    folds the per-head input linear into the QKV projections, builds the fused
    [K|V|Q] weight, pre-casts MXU weights to bf16 and precomputes the
    block-diagonal + causal additive bias."""
    NH = params["num_heads"]
    H = params["hidden_sz"]
    D = params["w_in"].shape[1]
    F = NH * H
    prec = lax.Precision.HIGHEST

    # exact algebra: wq_eff[h] = w_in[h] @ wq[h], bq_eff[h] = b_in[h] @ wq[h]
    def fold(w):
        w_eff = jnp.einsum('hde,hef->hdf', params["w_in"], w, precision=prec)  # (NH,D,H)
        b_eff = jnp.einsum('hoe,hef->hof', params["b_in"], w, precision=prec)  # (NH,1,H)
        # head-major columns: [head0 H cols | head1 H cols | ...]
        return (jnp.transpose(w_eff, (1, 0, 2)).reshape(D, F), b_eff.reshape(1, F))

    wq_all, bq_all = fold(params["wq"])
    wk_all, bk_all = fold(params["wk"])
    wv_all, bv_all = fold(params["wv"])
    # column order [K_all | V_all | Q_all]: K|V slab lane-aligned at offset 0
    w_qkv = jnp.concatenate([wk_all, wv_all, wq_all], axis=1).astype(jnp.bfloat16)
    b_qkv = jnp.concatenate([bk_all, bv_all, bq_all], axis=1)      # f32

    # block-diagonal (same batch) + causal (key <= query) additive bias, finite
    idx = jnp.arange(batch * seq)
    b_id = idx // seq
    s_id = idx % seq
    valid = (b_id[:, None] == b_id[None, :]) & (s_id[None, :] <= s_id[:, None])
    bias = jnp.where(valid, 0.0, NEG_BIG).astype(jnp.float32)

    return {
        "num_heads": NH, "hidden_sz": H, "input_sz": D,
        "batch": batch, "seq": seq,
        "ln_g": params["ln_g"], "ln_b": params["ln_b"],
        "w_qkv": w_qkv, "b_qkv": b_qkv,
        "w_out": params["w_out"].astype(jnp.bfloat16), "b_out": params["b_out"],
        "w1": params["w1"].astype(jnp.bfloat16), "b1": params["b1"],
        "w2": params["w2"].astype(jnp.bfloat16), "b2": params["b2"],
        "bias": bias,
    }


def gpt2_block_forward(x, pp):
    """x: (B, S, D) f32, pp: output of prepare_gpt2_block_params.
    Returns (out (B,S,D), kv_caches (NH, 2, B, S, H))."""
    B, S, D = x.shape
    assert B == pp["batch"] and S == pp["seq"] and D == pp["input_sz"]
    NH, H = pp["num_heads"], pp["hidden_sz"]
    F = NH * H

    kernel = functools.partial(gpt2_block_kernel, num_heads=NH, hidden_sz=H)

    def full(shape):
        n = len(shape)
        return pl.BlockSpec(shape, lambda *_, _n=n: (0,) * _n)

    in_specs = [
        full((B * S, D)),                      # x (flattened, whole problem)
        full((1, D)), full((1, D)),            # ln gamma / beta
        full((D, 3 * F)), full((1, 3 * F)),    # fused K|V|Q
        full((F, D)), full((1, D)),            # out linear
        full((D, H)), full((1, H)),            # linear_before_gelu
        full((H, D)), full((1, D)),            # linear_after_gelu
        full((B * S, B * S)),                  # precomputed additive bias
    ]
    out_specs = (
        full((B * S, D)),
        full((B * S, 2 * F)),
    )
    out_shapes = (
        jax.ShapeDtypeStruct((B * S, D), jnp.float32),
        jax.ShapeDtypeStruct((B * S, 2 * F), jnp.float32),
    )

    # single invocation: no grid, no dimension_semantics (no per-step overhead)
    out, kv_flat = pl.pallas_call(
        kernel,
        out_shape=out_shapes,
        in_specs=in_specs,
        out_specs=out_specs,
    )(
        x.reshape(B * S, D),
        pp["ln_g"], pp["ln_b"],
        pp["w_qkv"], pp["b_qkv"],
        pp["w_out"], pp["b_out"],
        pp["w1"], pp["b1"],
        pp["w2"], pp["b2"],
        pp["bias"],
    )
    # (B*S, 2F) columns are [kvslot, head, dim]; reorganize to (NH, 2, B, S, H)
    # on a tiny array in the wrapper (kernel store stays lane-aligned).
    kv = kv_flat.reshape(B, S, 2, NH, H).transpose(3, 2, 0, 1, 4)
    return out.reshape(B, S, D), kv


def gpt2_block_ref(x, p):
    """Pure-JAX reference mirroring the PyTorch forward (no-cache branch)."""
    NH, H = p["num_heads"], p["hidden_sz"]
    B, S, D = x.shape
    prec = lax.Precision.HIGHEST

    mean = jnp.mean(x, -1, keepdims=True)
    var = jnp.mean((x - mean) ** 2, -1, keepdims=True)
    x_ln = (x - mean) / jnp.sqrt(var + LN_EPS) * p["ln_g"][0] + p["ln_b"][0]

    mask = jnp.triu(jnp.ones((S, S), bool), k=1)
    heads, ks, vs = [], [], []
    for h in range(NH):
        xw = jnp.matmul(x_ln, p["w_in"][h], precision=prec) + p["b_in"][h]
        q = jnp.matmul(xw, p["wq"][h], precision=prec)
        k = jnp.matmul(xw, p["wk"][h], precision=prec)
        v = jnp.matmul(xw, p["wv"][h], precision=prec)
        scores = jnp.einsum("bqh,bkh->bqk", q, k, precision=prec)
        scores = jnp.where(mask, -jnp.inf, scores)
        att = jax.nn.softmax(scores, axis=-1)
        heads.append(jnp.einsum("bqk,bkh->bqh", att, v, precision=prec))
        ks.append(k)
        vs.append(v)
    concat = jnp.concatenate(heads, -1)
    attn_out = jnp.matmul(concat, p["w_out"], precision=prec) + p["b_out"][0]
    x1 = attn_out + x
    h1 = jnp.matmul(x1, p["w1"], precision=prec) + p["b1"][0]
    g = _gelu_tanh(h1)
    out = jnp.matmul(g, p["w2"], precision=prec) + p["b2"][0] + x1
    kv = jnp.stack([jnp.stack([k, v]) for k, v in zip(ks, vs)])  # (NH,2,B,S,H)
    return out, kv


if __name__ == "__main__":
    B, S, D, H, NH = 2, 8, 32, 32, 2

    key = jax.random.PRNGKey(0)
    keys = jax.random.split(key, 16)
    scale = jnp.float32(0.05)

    params = {
        "num_heads": NH,
        "hidden_sz": H,
        "ln_g": 1.0 + 0.1 * jax.random.normal(keys[1], (1, D), jnp.float32),
        "ln_b": 0.1 * jax.random.normal(keys[2], (1, D), jnp.float32),
        "w_in": scale * jax.random.normal(keys[3], (NH, D, D), jnp.float32),
        "b_in": scale * jax.random.normal(keys[4], (NH, 1, D), jnp.float32),
        "wq": scale * jax.random.normal(keys[5], (NH, D, H), jnp.float32),
        "wk": scale * jax.random.normal(keys[6], (NH, D, H), jnp.float32),
        "wv": scale * jax.random.normal(keys[7], (NH, D, H), jnp.float32),
        "w_out": scale * jax.random.normal(keys[8], (NH * H, D), jnp.float32),
        "b_out": scale * jax.random.normal(keys[9], (1, D), jnp.float32),
        "w1": scale * jax.random.normal(keys[10], (D, H), jnp.float32),
        "b1": scale * jax.random.normal(keys[11], (1, H), jnp.float32),
        "w2": scale * jax.random.normal(keys[12], (H, D), jnp.float32),
        "b2": scale * jax.random.normal(keys[13], (1, D), jnp.float32),
    }

    x = jax.random.normal(keys[0], (B, S, D), jnp.float32)
    # kv_cache argument of the torch module: per-head caches of shape (2,)
    # select the empty-cache (causal prefill) branch -> not consumed by kernel.

    # one-time parameter preprocessing (kept out of the per-call hot path)
    prepped = prepare_gpt2_block_params(params, batch=B, seq=S)
    prepped = jax.block_until_ready(prepped)

    out, kv = gpt2_block_forward(x, prepped)
    out, kv = jax.block_until_ready((out, kv))

    out_ref, kv_ref = gpt2_block_ref(x, params)
    assert out.shape == (B, S, D) and kv.shape == (NH, 2, B, S, H)
    # tolerance accounts for bf16 MXU operands (f32 accumulation) + approx reciprocal
    assert jnp.allclose(out, out_ref, rtol=2e-2, atol=3e-3), (
        float(jnp.max(jnp.abs(out - out_ref))))
    assert jnp.allclose(kv, kv_ref, rtol=2e-2, atol=3e-3), (
        float(jnp.max(jnp.abs(kv - kv_ref))))

    print("KERNEL_OK")
</pallas_src>

<mosaic_0001>
module attributes {stable_mosaic.version = 11 : i64} {
  func.func @gpt2_block_kernel(%arg0: memref<16x32xf32, #tpu.memory_space<vmem>>, %arg1: memref<1x32xf32, #tpu.memory_space<vmem>>, %arg2: memref<1x32xf32, #tpu.memory_space<vmem>>, %arg3: memref<32x192xbf16, #tpu.memory_space<vmem>>, %arg4: memref<1x192xf32, #tpu.memory_space<vmem>>, %arg5: memref<64x32xbf16, #tpu.memory_space<vmem>>, %arg6: memref<1x32xf32, #tpu.memory_space<vmem>>, %arg7: memref<32x32xbf16, #tpu.memory_space<vmem>>, %arg8: memref<1x32xf32, #tpu.memory_space<vmem>>, %arg9: memref<32x32xbf16, #tpu.memory_space<vmem>>, %arg10: memref<1x32xf32, #tpu.memory_space<vmem>>, %arg11: memref<16x16xf32, #tpu.memory_space<vmem>>, %arg12: memref<16x32xf32, #tpu.memory_space<vmem>>, %arg13: memref<16x128xf32, #tpu.memory_space<vmem>>) attributes {dimension_semantics = [], scalar_prefetch = 0 : i64, scratch_operands = 0 : i64, tpu.core_type = #tpu.core_type<tc>} {
    %c0 = arith.constant 0 : index
    %c0_0 = arith.constant 0 : index
    %0 = vector.load %arg0[%c0, %c0_0] : memref<16x32xf32, #tpu.memory_space<vmem>>, vector<16x32xf32>
    %cst = arith.constant dense<0.000000e+00> : vector<16xf32>
    %1 = vector.multi_reduction <add>, %0, %cst [1] : vector<16x32xf32> to vector<16xf32>
    %2 = vector.shape_cast %1 : vector<16xf32> to vector<16x1xf32>
    %cst_1 = arith.constant 3.200000e+01 : f32
    %3 = vector.broadcast %cst_1 : f32 to vector<16x1xf32>
    %4 = arith.divf %2, %3 : vector<16x1xf32>
    %5 = vector.broadcast %4 : vector<16x1xf32> to vector<16x32xf32>
    %6 = arith.subf %0, %5 : vector<16x32xf32>
    %7 = arith.mulf %6, %6 : vector<16x32xf32>
    %cst_2 = arith.constant dense<0.000000e+00> : vector<16xf32>
    %8 = vector.multi_reduction <add>, %7, %cst_2 [1] : vector<16x32xf32> to vector<16xf32>
    %9 = vector.shape_cast %8 : vector<16xf32> to vector<16x1xf32>
    %cst_3 = arith.constant 3.200000e+01 : f32
    %10 = vector.broadcast %cst_3 : f32 to vector<16x1xf32>
    %11 = arith.divf %9, %10 : vector<16x1xf32>
    %12 = vector.broadcast %4 : vector<16x1xf32> to vector<16x32xf32>
    %13 = arith.subf %0, %12 : vector<16x32xf32>
    %cst_4 = arith.constant 9.99999974E-6 : f32
    %14 = vector.broadcast %cst_4 : f32 to vector<16x1xf32>
    %15 = arith.addf %11, %14 : vector<16x1xf32>
    %16 = math.rsqrt %15 : vector<16x1xf32>
    %17 = vector.broadcast %16 : vector<16x1xf32> to vector<16x32xf32>
    %18 = arith.mulf %13, %17 : vector<16x32xf32>
    %c0_5 = arith.constant 0 : index
    %c0_6 = arith.constant 0 : index
    %19 = vector.load %arg1[%c0_5, %c0_6] : memref<1x32xf32, #tpu.memory_space<vmem>>, vector<1x32xf32>
    %20 = vector.shape_cast %19 : vector<1x32xf32> to vector<32xf32>
    %21 = vector.shape_cast %20 : vector<32xf32> to vector<1x32xf32>
    %22 = vector.broadcast %21 : vector<1x32xf32> to vector<16x32xf32>
    %23 = arith.mulf %18, %22 : vector<16x32xf32>
    %c0_7 = arith.constant 0 : index
    %c0_8 = arith.constant 0 : index
    %24 = vector.load %arg2[%c0_7, %c0_8] : memref<1x32xf32, #tpu.memory_space<vmem>>, vector<1x32xf32>
    %25 = vector.shape_cast %24 : vector<1x32xf32> to vector<32xf32>
    %26 = vector.shape_cast %25 : vector<32xf32> to vector<1x32xf32>
    %27 = vector.broadcast %26 : vector<1x32xf32> to vector<16x32xf32>
    %28 = arith.addf %23, %27 : vector<16x32xf32>
    %29 = arith.truncf %28 : vector<16x32xf32> to vector<16x32xbf16>
    %c0_9 = arith.constant 0 : index
    %c0_10 = arith.constant 0 : index
    %30 = vector.load %arg3[%c0_9, %c0_10] : memref<32x192xbf16, #tpu.memory_space<vmem>>, vector<32x192xbf16>
    %cst_11 = arith.constant dense<0.000000e+00> : vector<16x192xf32>
    %31 = tpu.matmul %29, %30, %cst_11 {dimension_numbers = #tpu.dot_dimension_numbers<[1], [0], [0], [1], [0, 0, 1, 1], [], []>} : vector<16x32xbf16>, vector<32x192xbf16>, vector<16x192xf32> -> vector<16x192xf32>
    %c0_12 = arith.constant 0 : index
    %c0_13 = arith.constant 0 : index
    %32 = vector.load %arg4[%c0_12, %c0_13] : memref<1x192xf32, #tpu.memory_space<vmem>>, vector<1x192xf32>
    %33 = vector.shape_cast %32 : vector<1x192xf32> to vector<192xf32>
    %34 = vector.shape_cast %33 : vector<192xf32> to vector<1x192xf32>
    %35 = vector.broadcast %34 : vector<1x192xf32> to vector<16x192xf32>
    %36 = arith.addf %31, %35 : vector<16x192xf32>
    %37 = vector.extract_strided_slice %36 {offsets = [0, 0], sizes = [16, 128], strides = [1, 1]} : vector<16x192xf32> to vector<16x128xf32>
    %c0_14 = arith.constant 0 : index
    %c0_15 = arith.constant 0 : index
    %38 = vector.load %arg13[%c0_14, %c0_15] : memref<16x128xf32, #tpu.memory_space<vmem>>, vector<16x128xf32>
    tpu.vector_store %arg13[%c0_14, %c0_15], %37 {strides = array<i32>} : memref<16x128xf32, #tpu.memory_space<vmem>>, vector<16x128xf32>,
    %39 = arith.truncf %36 : vector<16x192xf32> to vector<16x192xbf16>
    %c0_16 = arith.constant 0 : index
    %c0_17 = arith.constant 0 : index
    %40 = vector.load %arg11[%c0_16, %c0_17] : memref<16x16xf32, #tpu.memory_space<vmem>>, vector<16x16xf32>
    %41 = vector.extract_strided_slice %39 {offsets = [0, 0], sizes = [16, 32], strides = [1, 1]} : vector<16x192xbf16> to vector<16x32xbf16>
    %42 = vector.extract_strided_slice %39 {offsets = [0, 64], sizes = [16, 32], strides = [1, 1]} : vector<16x192xbf16> to vector<16x32xbf16>
    %43 = vector.extract_strided_slice %39 {offsets = [0, 128], sizes = [16, 32], strides = [1, 1]} : vector<16x192xbf16> to vector<16x32xbf16>
    %cst_18 = arith.constant dense<0.000000e+00> : vector<16x16xf32>
    %44 = tpu.matmul %43, %41, %cst_18 {dimension_numbers = #tpu.dot_dimension_numbers<[1], [1], [0], [0], [0, 0, 1, 0], [], []>} : vector<16x32xbf16>, vector<16x32xbf16>, vector<16x16xf32> -> vector<16x16xf32>
    %45 = arith.addf %44, %40 : vector<16x16xf32>
    %cst_19 = arith.constant dense<0xFF800000> : vector<16xf32>
    %46 = vector.multi_reduction <maximumf>, %45, %cst_19 [1] : vector<16x16xf32> to vector<16xf32>
    %47 = vector.shape_cast %46 : vector<16xf32> to vector<16x1xf32>
    %48 = vector.broadcast %47 : vector<16x1xf32> to vector<16x16xf32>
    %49 = arith.subf %45, %48 : vector<16x16xf32>
    %50 = math.exp %49 : vector<16x16xf32>
    %cst_20 = arith.constant dense<0.000000e+00> : vector<16xf32>
    %51 = vector.multi_reduction <add>, %50, %cst_20 [1] : vector<16x16xf32> to vector<16xf32>
    %52 = vector.shape_cast %51 : vector<16xf32> to vector<16x1xf32>
    %53 = tpu.reciprocal %52 {approx = true} : vector<16x1xf32> -> vector<16x1xf32>
    %54 = vector.broadcast %53 : vector<16x1xf32> to vector<16x16xf32>
    %55 = arith.mulf %50, %54 : vector<16x16xf32>
    %56 = arith.truncf %55 : vector<16x16xf32> to vector<16x16xbf16>
    %cst_21 = arith.constant dense<0.000000e+00> : vector<16x32xf32>
    %57 = tpu.matmul %56, %42, %cst_21 {dimension_numbers = #tpu.dot_dimension_numbers<[1], [0], [0], [1], [0, 0, 1, 1], [], []>} : vector<16x16xbf16>, vector<16x32xbf16>, vector<16x32xf32> -> vector<16x32xf32>
    %58 = vector.extract_strided_slice %39 {offsets = [0, 32], sizes = [16, 32], strides = [1, 1]} : vector<16x192xbf16> to vector<16x32xbf16>
    %59 = vector.extract_strided_slice %39 {offsets = [0, 96], sizes = [16, 32], strides = [1, 1]} : vector<16x192xbf16> to vector<16x32xbf16>
    %60 = vector.extract_strided_slice %39 {offsets = [0, 160], sizes = [16, 32], strides = [1, 1]} : vector<16x192xbf16> to vector<16x32xbf16>
    %cst_22 = arith.constant dense<0.000000e+00> : vector<16x16xf32>
    %61 = tpu.matmul %60, %58, %cst_22 {dimension_numbers = #tpu.dot_dimension_numbers<[1], [1], [0], [0], [0, 0, 1, 0], [], []>} : vector<16x32xbf16>, vector<16x32xbf16>, vector<16x16xf32> -> vector<16x16xf32>
    %62 = arith.addf %61, %40 : vector<16x16xf32>
    %cst_23 = arith.constant dense<0xFF800000> : vector<16xf32>
    %63 = vector.multi_reduction <maximumf>, %62, %cst_23 [1] : vector<16x16xf32> to vector<16xf32>
    %64 = vector.shape_cast %63 : vector<16xf32> to vector<16x1xf32>
    %65 = vector.broadcast %64 : vector<16x1xf32> to vector<16x16xf32>
    %66 = arith.subf %62, %65 : vector<16x16xf32>
    %67 = math.exp %66 : vector<16x16xf32>
    %cst_24 = arith.constant dense<0.000000e+00> : vector<16xf32>
    %68 = vector.multi_reduction <add>, %67, %cst_24 [1] : vector<16x16xf32> to vector<16xf32>
    %69 = vector.shape_cast %68 : vector<16xf32> to vector<16x1xf32>
    %70 = tpu.reciprocal %69 {approx = true} : vector<16x1xf32> -> vector<16x1xf32>
    %71 = vector.broadcast %70 : vector<16x1xf32> to vector<16x16xf32>
    %72 = arith.mulf %67, %71 : vector<16x16xf32>
    %73 = arith.truncf %72 : vector<16x16xf32> to vector<16x16xbf16>
    %cst_25 = arith.constant dense<0.000000e+00> : vector<16x32xf32>
    %74 = tpu.matmul %73, %59, %cst_25 {dimension_numbers = #tpu.dot_dimension_numbers<[1], [0], [0], [1], [0, 0, 1, 1], [], []>} : vector<16x16xbf16>, vector<16x32xbf16>, vector<16x32xf32> -> vector<16x32xf32>
    %75 = tpu.concatenate %57, %74 in 1 : vector<16x32xf32>, vector<16x32xf32> -> vector<16x64xf32>
    %76 = arith.truncf %75 : vector<16x64xf32> to vector<16x64xbf16>
    %c0_26 = arith.constant 0 : index
    %c0_27 = arith.constant 0 : index
    %77 = vector.load %arg5[%c0_26, %c0_27] : memref<64x32xbf16, #tpu.memory_space<vmem>>, vector<64x32xbf16>
    %cst_28 = arith.constant dense<0.000000e+00> : vector<16x32xf32>
    %78 = tpu.matmul %76, %77, %cst_28 {dimension_numbers = #tpu.dot_dimension_numbers<[1], [0], [0], [1], [0, 0, 1, 1], [], []>} : vector<16x64xbf16>, vector<64x32xbf16>, vector<16x32xf32> -> vector<16x32xf32>
    %c0_29 = arith.constant 0 : index
    %c0_30 = arith.constant 0 : index
    %79 = vector.load %arg6[%c0_29, %c0_30] : memref<1x32xf32, #tpu.memory_space<vmem>>, vector<1x32xf32>
    %80 = vector.shape_cast %79 : vector<1x32xf32> to vector<32xf32>
    %81 = vector.shape_cast %80 : vector<32xf32> to vector<1x32xf32>
    %82 = vector.broadcast %81 : vector<1x32xf32> to vector<16x32xf32>
    %83 = arith.addf %78, %82 : vector<16x32xf32>
    %84 = arith.addf %83, %0 : vector<16x32xf32>
    %85 = arith.truncf %84 : vector<16x32xf32> to vector<16x32xbf16>
    %c0_31 = arith.constant 0 : index
    %c0_32 = arith.constant 0 : index
    %86 = vector.load %arg7[%c0_31, %c0_32] : memref<32x32xbf16, #tpu.memory_space<vmem>>, vector<32x32xbf16>
    %cst_33 = arith.constant dense<0.000000e+00> : vector<16x32xf32>
    %87 = tpu.matmul %85, %86, %cst_33 {dimension_numbers = #tpu.dot_dimension_numbers<[1], [0], [0], [1], [0, 0, 1, 1], [], []>} : vector<16x32xbf16>, vector<32x32xbf16>, vector<16x32xf32> -> vector<16x32xf32>
    %c0_34 = arith.constant 0 : index
    %c0_35 = arith.constant 0 : index
    %88 = vector.load %arg8[%c0_34, %c0_35] : memref<1x32xf32, #tpu.memory_space<vmem>>, vector<1x32xf32>
    %89 = vector.shape_cast %88 : vector<1x32xf32> to vector<32xf32>
    %90 = vector.shape_cast %89 : vector<32xf32> to vector<1x32xf32>
    %91 = vector.broadcast %90 : vector<1x32xf32> to vector<16x32xf32>
    %92 = arith.addf %87, %91 : vector<16x32xf32>
    %cst_36 = arith.constant 5.000000e-01 : f32
    %93 = vector.broadcast %cst_36 : f32 to vector<16x32xf32>
    %94 = arith.mulf %93, %92 : vector<16x32xf32>
    %95 = arith.mulf %92, %92 : vector<16x32xf32>
    %96 = arith.mulf %92, %95 : vector<16x32xf32>
    %cst_37 = arith.constant 4.471500e-02 : f32
    %97 = vector.broadcast %cst_37 : f32 to vector<16x32xf32>
    %98 = arith.mulf %97, %96 : vector<16x32xf32>
    %99 = arith.addf %92, %98 : vector<16x32xf32>
    %cst_38 = arith.constant 0.797884583 : f32
    %100 = vector.broadcast %cst_38 : f32 to vector<16x32xf32>
    %101 = arith.mulf %100, %99 : vector<16x32xf32>
    %102 = math.tanh %101 : vector<16x32xf32>
    %cst_39 = arith.constant 1.000000e+00 : f32
    %103 = vector.broadcast %cst_39 : f32 to vector<16x32xf32>
    %104 = arith.addf %103, %102 : vector<16x32xf32>
    %105 = arith.mulf %94, %104 : vector<16x32xf32>
    %106 = arith.truncf %105 : vector<16x32xf32> to vector<16x32xbf16>
    %c0_40 = arith.constant 0 : index
    %c0_41 = arith.constant 0 : index
    %107 = vector.load %arg9[%c0_40, %c0_41] : memref<32x32xbf16, #tpu.memory_space<vmem>>, vector<32x32xbf16>
    %cst_42 = arith.constant dense<0.000000e+00> : vector<16x32xf32>
    %108 = tpu.matmul %106, %107, %cst_42 {dimension_numbers = #tpu.dot_dimension_numbers<[1], [0], [0], [1], [0, 0, 1, 1], [], []>} : vector<16x32xbf16>, vector<32x32xbf16>, vector<16x32xf32> -> vector<16x32xf32>
    %c0_43 = arith.constant 0 : index
    %c0_44 = arith.constant 0 : index
    %109 = vector.load %arg10[%c0_43, %c0_44] : memref<1x32xf32, #tpu.memory_space<vmem>>, vector<1x32xf32>
    %110 = vector.shape_cast %109 : vector<1x32xf32> to vector<32xf32>
    %111 = vector.shape_cast %110 : vector<32xf32> to vector<1x32xf32>
    %112 = vector.broadcast %111 : vector<1x32xf32> to vector<16x32xf32>
    %113 = arith.addf %108, %112 : vector<16x32xf32>
    %114 = arith.addf %113, %84 : vector<16x32xf32>
    %c0_45 = arith.constant 0 : index
    %c0_46 = arith.constant 0 : index
    %115 = vector.load %arg12[%c0_45, %c0_46] : memref<16x32xf32, #tpu.memory_space<vmem>>, vector<16x32xf32>
    tpu.vector_store %arg12[%c0_45, %c0_46], %114 {strides = array<i32>} : memref<16x32xf32, #tpu.memory_space<vmem>>, vector<16x32xf32>,
    return
  }
}

</mosaic_0001>

<llo_original>
// kernel: tpu_custom_call.1
$region0: #{tpu_custom_call.1}
  #allocation0 [shape = 'u32[]', space=smem, size = 0x4, offset = 0x4, fixed_abs, tag = 'smem constant byte address 0x4 - core index']
  #allocation1 [shape = 'u32[144,128]{1,0:T(1,128)}', space=vmem, size = 0x12000, scoped, tag = 'internal scratch']
  %s0 = inlined_call_operand.vmem [shape: f32[16,32], index: 0, kind: input, shape index: {}]
  %s1 = inlined_call_operand.hbm [shape: f32[1,32], index: 1, kind: input, shape index: {}]
  %s2 = inlined_call_operand.hbm [shape: f32[1,32], index: 2, kind: input, shape index: {}]
  %s3 = inlined_call_operand.vmem [shape: bf16[32,192], index: 3, kind: input, shape index: {}]
  %s4 = inlined_call_operand.vmem [shape: f32[1,192], index: 4, kind: input, shape index: {}]
  %s5 = inlined_call_operand.vmem [shape: bf16[64,32], index: 5, kind: input, shape index: {}]
  %s6 = inlined_call_operand.hbm [shape: f32[1,32], index: 6, kind: input, shape index: {}]
  %s7 = inlined_call_operand.hbm [shape: bf16[32,32], index: 7, kind: input, shape index: {}]
  %s8 = inlined_call_operand.hbm [shape: f32[1,32], index: 8, kind: input, shape index: {}]
  %s9 = inlined_call_operand.vmem [shape: bf16[32,32], index: 9, kind: input, shape index: {}]
  %s10 = inlined_call_operand.vmem [shape: f32[1,32], index: 10, kind: input, shape index: {}]
  %s11 = inlined_call_operand.hbm [shape: f32[16,16], index: 11, kind: input, shape index: {}]
  %s12 = inlined_call_operand.hbm [shape: f32[16,32], index: 12, kind: output, shape index: {0}]
  %s13 = inlined_call_operand.hbm [shape: f32[16,128], index: 13, kind: output, shape index: {1}]
  %14 = xla_tuple %s12, %s13
  %s15 = sld [smem:[#allocation0]]
  $region90: #{tpu_custom_call.1} parent=0
    _
  %s17 = ssub.s32 1, %s15
  %s18 = scalar_select 0, %s17, %s15
  $region1: #{tpu_custom_call.1} parent=0
    #allocation2 [shape = 'u8[512]{0}', space=vmem, size = 0x400, scoped, tag = 'input window, operand 1, single buffered']
    #allocation3 [shape = 's32[1]{0}', space=sflag, size = 0x4, scoped, tag = 'scoped memory for tpu_custom_call.1']
    #allocation4 [shape = 's32[1]{0}', space=sflag, size = 0x4, scoped, tag = 'scoped memory for tpu_custom_call.1']
    #allocation5 [shape = 'u8[512]{0}', space=vmem, size = 0x400, scoped, tag = 'input window, operand 2, single buffered']
    #allocation6 [shape = 's32[1]{0}', space=sflag, size = 0x4, scoped, tag = 'scoped memory for tpu_custom_call.1']
    #allocation7 [shape = 'u8[512]{0}', space=vmem, size = 0x400, scoped, tag = 'input window, operand 6, single buffered']
    #allocation8 [shape = 'u8[8192]{0}', space=vmem, size = 0x2000, scoped, tag = 'input window, operand 7, single buffered']
    #allocation9 [shape = 's32[1]{0}', space=sflag, size = 0x4, scoped, tag = 'scoped memory for tpu_custom_call.1']
    #allocation10 [shape = 'u8[512]{0}', space=vmem, size = 0x400, scoped, tag = 'input window, operand 8, single buffered']
    #allocation11 [shape = 'u8[8192]{0}', space=vmem, size = 0x2000, scoped, tag = 'input window, operand 11, single buffered']
    #allocation12 [shape = 's32[1]{0}', space=sflag, size = 0x4, scoped, tag = 'scoped memory for tpu_custom_call.1']
    #allocation13 [shape = 'u8[8192]{0}', space=vmem, size = 0x2000, scoped, tag = 'output window, operand 0, single buffered']
    #allocation14 [shape = 'u8[8192]{0}', space=vmem, size = 0x2000, scoped, tag = 'output window, operand 1, single buffered']
    #allocation15 [shape = 's32[1]{0}', space=sflag, size = 0x4, scoped, tag = 'scoped memory for tpu_custom_call.1']
    %19 = vsyncpa [#allocation3], 0
    %20 = vsyncpa [#allocation6], 0
    %21 = vsyncpa [#allocation9], 0
    %22 = vsyncpa [#allocation12], 0
    %23 = vsyncpa [#allocation4], 0
    %24 = vsyncpa [#allocation15], 0
    // Predicated region
    $region2: #{tpu_custom_call.1} parent=1 // pred_check
      _
    $region3: #{tpu_custom_call.1} parent=1 // pred_check_branch
      %26 = sbr.rel (0) target = $region5
    $region4: #{tpu_custom_call.1} parent=1 // pred_region
      _
    $region5: #{tpu_custom_call.1} parent=1 // pred_fallthru
      _
    // Predicated region
    $region6: #{tpu_custom_call.1} parent=1 // pred_check
      _
    $region7: #{tpu_custom_call.1} parent=1 // pred_check_branch
      %28 = sbr.rel (0) target = $region9
    $region8: #{tpu_custom_call.1} parent=1 // pred_region
      %s30 = ssub.s32 16, 16
      %31 = vsyncadd [#allocation3], %s30
      %s33 = sshll.u32 [#allocation2], 4
      %s34 = int_to_ptr.vmem [resolvable:$true] %s33
      %36 = dma.hbm_to_vmem [thread:$0]  %s1, 16, %s34, [#allocation3]
    $region9: #{tpu_custom_call.1} parent=1 // pred_fallthru
      _
    // Predicated region
    $region10: #{tpu_custom_call.1} parent=1 // pred_check
      _
    $region11: #{tpu_custom_call.1} parent=1 // pred_check_branch
      %38 = sbr.rel (0) target = $region13
    $region12: #{tpu_custom_call.1} parent=1 // pred_region
      %s40 = ssub.s32 16, 16
      %41 = vsyncadd [#allocation6], %s40
      %s43 = sshll.u32 [#allocation5], 4
      %s44 = int_to_ptr.vmem [resolvable:$true] %s43
      %46 = dma.hbm_to_vmem [thread:$0]  %s2, 16, %s44, [#allocation6]
    $region13: #{tpu_custom_call.1} parent=1 // pred_fallthru
      _
    // Predicated region
    $region14: #{tpu_custom_call.1} parent=1 // pred_check
      _
    $region15: #{tpu_custom_call.1} parent=1 // pred_check_branch
      %48 = sbr.rel (0) target = $region17
    $region16: #{tpu_custom_call.1} parent=1 // pred_region
      _
    $region17: #{tpu_custom_call.1} parent=1 // pred_fallthru
      _
    // Predicated region
    $region18: #{tpu_custom_call.1} parent=1 // pred_check
      _
    $region19: #{tpu_custom_call.1} parent=1 // pred_check_branch
      %50 = sbr.rel (0) target = $region21
    $region20: #{tpu_custom_call.1} parent=1 // pred_region
      _
    $region21: #{tpu_custom_call.1} parent=1 // pred_fallthru
      _
    // Predicated region
    $region22: #{tpu_custom_call.1} parent=1 // pred_check
      _
    $region23: #{tpu_custom_call.1} parent=1 // pred_check_branch
      %52 = sbr.rel (0) target = $region25
    $region24: #{tpu_custom_call.1} parent=1 // pred_region
      _
    $region25: #{tpu_custom_call.1} parent=1 // pred_fallthru
      _
    // Predicated region
    $region26: #{tpu_custom_call.1} parent=1 // pred_check
      _
    $region27: #{tpu_custom_call.1} parent=1 // pred_check_branch
      %54 = sbr.rel (0) target = $region29
    $region28: #{tpu_custom_call.1} parent=1 // pred_region
      %s56 = ssub.s32 16, 16
      %57 = vsyncadd [#allocation6], %s56
      %s59 = sshll.u32 [#allocation7], 4
      %s60 = int_to_ptr.vmem [resolvable:$true] %s59
      %62 = dma.hbm_to_vmem [thread:$0]  %s6, 16, %s60, [#allocation6]
    $region29: #{tpu_custom_call.1} parent=1 // pred_fallthru
      _
    // Predicated region
    $region30: #{tpu_custom_call.1} parent=1 // pred_check
      _
    $region31: #{tpu_custom_call.1} parent=1 // pred_check_branch
      %64 = sbr.rel (0) target = $region33
    $region32: #{tpu_custom_call.1} parent=1 // pred_region
      %s66 = ssub.s32 256, 256
      %67 = vsyncadd [#allocation9], %s66
      %s68 = sshll.u32 [#allocation8], 4
      %s69 = int_to_ptr.vmem [resolvable:$true] %s68
      %74 = dma.hbm_to_vmem [thread:$0]  %s7, 256, %s69, [#allocation9], 64, 64, 4
    $region33: #{tpu_custom_call.1} parent=1 // pred_fallthru
      _
    // Predicated region
    $region34: #{tpu_custom_call.1} parent=1 // pred_check
      _
    $region35: #{tpu_custom_call.1} parent=1 // pred_check_branch
      %76 = sbr.rel (0) target = $region37
    $region36: #{tpu_custom_call.1} parent=1 // pred_region
      %s78 = ssub.s32 16, 16
      %79 = vsyncadd [#allocation9], %s78
      %s81 = sshll.u32 [#allocation10], 4
      %s82 = int_to_ptr.vmem [resolvable:$true] %s81
      %84 = dma.hbm_to_vmem [thread:$0]  %s8, 16, %s82, [#allocation9]
    $region37: #{tpu_custom_call.1} parent=1 // pred_fallthru
      _
    // Predicated region
    $region38: #{tpu_custom_call.1} parent=1 // pred_check
      _
    $region39: #{tpu_custom_call.1} parent=1 // pred_check_branch
      %86 = sbr.rel (0) target = $region41
    $region40: #{tpu_custom_call.1} parent=1 // pred_region
      _
    $region41: #{tpu_custom_call.1} parent=1 // pred_fallthru
      _
    // Predicated region
    $region42: #{tpu_custom_call.1} parent=1 // pred_check
      _
    $region43: #{tpu_custom_call.1} parent=1 // pred_check_branch
      %88 = sbr.rel (0) target = $region45
    $region44: #{tpu_custom_call.1} parent=1 // pred_region
      _
    $region45: #{tpu_custom_call.1} parent=1 // pred_fallthru
      _
    // Predicated region
    $region46: #{tpu_custom_call.1} parent=1 // pred_check
      _
    $region47: #{tpu_custom_call.1} parent=1 // pred_check_branch
      %90 = sbr.rel (0) target = $region49
    $region48: #{tpu_custom_call.1} parent=1 // pred_region
      %s92 = ssub.s32 256, 256
      %93 = vsyncadd [#allocation12], %s92
      %s94 = sshll.u32 [#allocation11], 4
      %s95 = int_to_ptr.vmem [resolvable:$true] %s94
      %100 = dma.hbm_to_vmem [thread:$0]  %s11, 256, %s95, [#allocation12], 128, 128, 8
    $region49: #{tpu_custom_call.1} parent=1 // pred_fallthru
      _
    // Predicated region
    $region50: #{tpu_custom_call.1} parent=1 // pred_check
      _
    $region51: #{tpu_custom_call.1} parent=1 // pred_check_branch
      %102 = sbr.rel (0) target = $region53
    $region52: #{tpu_custom_call.1} parent=1 // pred_region
      %103 = dma.done [#allocation3], 16
    $region53: #{tpu_custom_call.1} parent=1 // pred_fallthru
      _
    // Predicated region
    $region54: #{tpu_custom_call.1} parent=1 // pred_check
      _
    $region55: #{tpu_custom_call.1} parent=1 // pred_check_branch
      %105 = sbr.rel (0) target = $region57
    $region56: #{tpu_custom_call.1} parent=1 // pred_region
      %106 = dma.done [#allocation6], 16
    $region57: #{tpu_custom_call.1} parent=1 // pred_fallthru
      _
    // Predicated region
    $region58: #{tpu_custom_call.1} parent=1 // pred_check
      _
    $region59: #{tpu_custom_call.1} parent=1 // pred_check_branch
      %108 = sbr.rel (0) target = $region61
    $region60: #{tpu_custom_call.1} parent=1 // pred_region
      %109 = dma.done [#allocation6], 16
    $region61: #{tpu_custom_call.1} parent=1 // pred_fallthru
      _
    // Predicated region
    $region62: #{tpu_custom_call.1} parent=1 // pred_check
      _
    $region63: #{tpu_custom_call.1} parent=1 // pred_check_branch
      %111 = sbr.rel (0) target = $region65
    $region64: #{tpu_custom_call.1} parent=1 // pred_region
      %112 = dma.done [#allocation9], 256
    $region65: #{tpu_custom_call.1} parent=1 // pred_fallthru
      _
    // Predicated region
    $region66: #{tpu_custom_call.1} parent=1 // pred_check
      _
    $region67: #{tpu_custom_call.1} parent=1 // pred_check_branch
      %114 = sbr.rel (0) target = $region69
    $region68: #{tpu_custom_call.1} parent=1 // pred_region
      %115 = dma.done [#allocation9], 16
    $region69: #{tpu_custom_call.1} parent=1 // pred_fallthru
      _
    // Predicated region
    $region70: #{tpu_custom_call.1} parent=1 // pred_check
      _
    $region71: #{tpu_custom_call.1} parent=1 // pred_check_branch
      %117 = sbr.rel (0) target = $region73
    $region72: #{tpu_custom_call.1} parent=1 // pred_region
      %118 = dma.done [#allocation12], 256
    $region73: #{tpu_custom_call.1} parent=1 // pred_fallthru
      _
    %v120 = vld [vmem:[%s0] sm:$0xff]
    %v121 = vld [vmem:[%s0 + $0x8] sm:$0xff]
    %vm122 = vcmask 261120
    %v123 = vsel %vm122, %v120, 0.0
    %124 = vadd.xlane.f32.xlu0 %v123
    %v125 = vpop.xlane.xlu0 %124
    %v126 = vsel %vm122, %v121, 0.0
    %127 = vadd.xlane.f32.xlu0 %v126
    %v128 = vpop.xlane.xlu0 %127
    %v129 = vrcp.pop 32.0
    %v130 = vmul.f32 %v125, %v129
    %v131 = vmul.f32 %v128, %v129
    %v132 = vsub.f32 %v120, %v130
    %v133 = vsub.f32 %v121, %v131
    %v134 = vmul.f32 %v132, %v132
    %v135 = vmul.f32 %v133, %v133
    %v136 = vsel %vm122, %v134, 0.0
    %137 = vadd.xlane.f32.xlu0 %v136
    %v138 = vpop.xlane.xlu0 %137
    %v139 = vsel %vm122, %v135, 0.0
    %140 = vadd.xlane.f32.xlu0 %v139
    %v141 = vpop.xlane.xlu0 %140
    %v142 = vmul.f32 %v138, %v129
    %v143 = vmul.f32 %v141, %v129
    %v144 = vadd.f32 %v142, 1e-05
    %v145 = vadd.f32 %v143, 1e-05
    %v146 = vrsqrt.pop %v144
    %v147 = vrsqrt.pop %v145
    %v148 = vmul.f32 %v132, %v146
    %v149 = vmul.f32 %v133, %v147
    %v150 = vld [vmem:[#allocation2] sm:$0x1]
    %v152 = vlaneseq
    %v153 = vshrl.u32 %v152, 7
    %v154 = vsub.s32 0, %v153
    %v155 = vrot.slane %v150, %v154
    %v157 = vmul.f32 %v148, %v155
    %v158 = vmul.f32 %v149, %v155
    %v159 = vld [vmem:[#allocation5] sm:$0x1]
    %v161 = vlaneseq
    %v162 = vshrl.u32 %v161, 7
    %v163 = vsub.s32 0, %v162
    %v164 = vrot.slane %v159, %v163
    %v166 = vadd.f32 %v157, %v164
    %v167 = vadd.f32 %v158, %v164
    %v168 = vpack.c.bf16 %v167, %v166
    %v169 = vld [vmem:[%s3] sm:$0xff]
    %v170 = vld [vmem:[%s3 + $0x8] sm:$0xff]
    %v171 = vld [vmem:[%s3 + $0x10] sm:$0xff]
    %v172 = vld [vmem:[%s3 + $0x18] sm:$0xff]
    %v173 = vld [vmem:[%s4] sm:$0x3]
    %v175 = vlaneseq
    %v176 = vshrl.u32 %v175, 7
    %v177 = vsub.s32 0, %v176
    %v178 = vrot.slane %v173, %v177
    %v179 = vlaneseq
    %v180 = vshrl.u32 %v179, 7
    %v181 = vsub.s32 1, %v180
    %v182 = vrot.slane %v173, %v181
    %v189 = vunpack.c.l.b16 %v169
    %v190 = vunpack.c.h.b16 %v169
    %v191 = vunpack.c.l.b16 %v170
    %v192 = vunpack.c.h.b16 %v170
    %v193 = vunpack.c.l.b16 %v171
    %v194 = vunpack.c.h.b16 %v171
    %v195 = vunpack.c.l.b16 %v172
    %v196 = vunpack.c.h.b16 %v172
    %v197 = vpack.c.b16 %v191, %v189
    %v198 = vpack.c.b16 %v192, %v190
    %v199 = vpack.c.b16 %v195, %v193
    %v200 = vpack.c.b16 %v196, %v194
    %v206 = vsel %vm122, %v168, 0
    %208 = vmatprep.subr.bf16.mxu0 %v198
    %209 = vmatpush1.bf16.msra.mxu0 %v197
    %210 = vmatprep.subr.bf16.mxu0 %v200
    %211 = vmatpush1.bf16.msra.mxu0 %v199
    %212 = vmatprep.subr.bf16.mxu0 0
    %213 = vmatpush1.bf16.msra.mxu0 0
    %214 = vmatprep.subr.bf16.mxu0 0
    %215 = vmatpush1.bf16.msra.mxu0 0
    %216 = vmatprep.subr.bf16.mxu0 0
    %217 = vmatpush1.bf16.msra.mxu0 0
    %218 = vmatprep.subr.bf16.mxu0 0
    %219 = vmatpush1.bf16.msra.mxu0 0
    %220 = vmatprep.subr.bf16.mxu0 0
    %221 = vmatpush1.bf16.msra.mxu0 0
    %222 = vmatprep.subr.bf16.mxu0 0
    %223 = vmatpush1.bf16.msra.mxu0 0
    %224 = vmatprep.subr.bf16.mxu0 0
    %225 = vmatpush1.bf16.msra.mxu0 0
    %226 = vmatprep.subr.bf16.mxu0 0
    %227 = vmatpush1.bf16.msra.mxu0 0
    %228 = vmatprep.subr.bf16.mxu0 0
    %229 = vmatpush1.bf16.msra.mxu0 0
    %230 = vmatprep.subr.bf16.mxu0 0
    %231 = vmatpush1.bf16.msra.mxu0 0
    %232 = vmatprep.subr.bf16.mxu0 0
    %233 = vmatpush1.bf16.msra.mxu0 0
    %234 = vmatprep.subr.bf16.mxu0 0
    %235 = vmatpush1.bf16.msra.mxu0 0
    %236 = vmatprep.subr.bf16.mxu0 0
    %237 = vmatpush1.bf16.msra.mxu0 0
    %238 = vmatprep.subr.bf16.mxu0 0
    %239 = vmatpush1.bf16.msra.mxu0 0
    %240 = vmatprep.mubr.bf16.mxu0 0
    %241 = vmatmul.mubr.bf16.gmra.mrb[0].mxu0 %v206
    %v242 = vpop.f32.mrb[0].mxu0
    %v243 = vadd.f32 %v178, %v242
    %v244 = vpop.f32.mrb[0].mxu0
    %v245 = vadd.f32 %v182, %v244
    %v246 = vpop.f32.mrb[0].mxu0
    %v247 = vadd.f32 %v178, %v246
    %v248 = vpop.f32.mrb[0].mxu0
    %v249 = vadd.f32 %v182, %v248
    %250 = vdwg.mxu0
    %251 = vst [vmem:[#allocation14] sm:$0xff] %v243
    %252 = vst [vmem:[#allocation14 + $0x8] sm:$0xff] %v247
    %v253 = vpack.c.bf16 %v247, %v243
    %v254 = vpack.c.bf16 %v249, %v245
    %v255 = vld [vmem:[#allocation11] sm:$0xff]
    %v256 = vld [vmem:[#allocation11 + $0x8] sm:$0xff]
    %v258 = vsel %vm122, %v254, 0
    %v261 = vsel %vm122, %v253, 0
    %263 = vmatprep.subr.bf16.mxu0 0
    %264 = vmatpush1.bf16.xpose.msra.mxu0 %v261
    %265 = vmatprep.subr.bf16.mxu0 0
    %266 = vmatpush1.bf16.xpose.msra.mxu0 0
    %267 = vmatprep.subr.bf16.mxu0 0
    %268 = vmatpush1.bf16.xpose.msra.mxu0 0
    %269 = vmatprep.subr.bf16.mxu0 0
    %270 = vmatpush1.bf16.xpose.msra.mxu0 0
    %271 = vmatprep.subr.bf16.mxu0 0
    %272 = vmatpush1.bf16.xpose.msra.mxu0 0
    %273 = vmatprep.subr.bf16.mxu0 0
    %274 = vmatpush1.bf16.xpose.msra.mxu0 0
    %275 = vmatprep.subr.bf16.mxu0 0
    %276 = vmatpush1.bf16.xpose.msra.mxu0 0
    %277 = vmatprep.subr.bf16.mxu0 0
    %278 = vmatpush1.bf16.xpose.msra.mxu0 0
    %279 = vmatprep.subr.bf16.mxu0 0
    %280 = vmatpush1.bf16.xpose.msra.mxu0 0
    %281 = vmatprep.subr.bf16.mxu0 0
    %282 = vmatpush1.bf16.xpose.msra.mxu0 0
    %283 = vmatprep.subr.bf16.mxu0 0
    %284 = vmatpush1.bf16.xpose.msra.mxu0 0
    %285 = vmatprep.subr.bf16.mxu0 0
    %286 = vmatpush1.bf16.xpose.msra.mxu0 0
    %287 = vmatprep.subr.bf16.mxu0 0
    %288 = vmatpush1.bf16.xpose.msra.mxu0 0
    %289 = vmatprep.subr.bf16.mxu0 0
    %290 = vmatpush1.bf16.xpose.msra.mxu0 0
    %291 = vmatprep.subr.bf16.mxu0 0
    %292 = vmatpush1.bf16.xpose.msra.mxu0 0
    %293 = vmatprep.subr.bf16.mxu0 0
    %294 = vmatpush1.bf16.xpose.msra.mxu0 0
    %295 = vmatprep.mubr.bf16.mxu0 0
    %296 = vmatmul.mubr.bf16.gmra.mrb[0].mxu0 %v258
    %v297 = vpop.f32.mrb[0].mxu0
    %v298 = vadd.f32 %v255, %v297
    %v299 = vpop.f32.mrb[0].mxu0
    %v300 = vpop.f32.mrb[0].mxu0
    %v301 = vadd.f32 %v256, %v300
    %v302 = vpop.f32.mrb[0].mxu0
    %303 = vdwg.mxu0
    %vm304 = vcmask 130048
    %v305 = vsel %vm304, %v298, -inf
    %306 = vmax.xlane.f32.xlu0 %v305
    %v307 = vpop.xlane.xlu0 %306
    %v308 = vsel %vm304, %v301, -inf
    %309 = vmax.xlane.f32.xlu0 %v308
    %v310 = vpop.xlane.xlu0 %309
    %v311 = vsub.f32 %v298, %v307
    %v312 = vsub.f32 %v301, %v310
    %v313 = vmul.f32 %v311, 1.442695
    %v314 = vpow.pop %v313
    %v315 = vmul.f32 %v312, 1.442695
    %v316 = vpow.pop %v315
    %v317 = vsel %vm304, %v314, 0.0
    %318 = vadd.xlane.f32.xlu0 %v317
    %v319 = vpop.xlane.xlu0 %318
    %v320 = vsel %vm304, %v316, 0.0
    %321 = vadd.xlane.f32.xlu0 %v320
    %v322 = vpop.xlane.xlu0 %321
    %v323 = vrcp.pop %v319
    %v324 = vrcp.pop %v322
    %v325 = vmul.f32 %v314, %v323
    %v326 = vmul.f32 %v316, %v324
    %v327 = vpack.c.bf16 %v326, %v325
    %329 = vrot.lane.b32.xlu0 %v253, 64
    %v330 = vpop.permute.xlu0 %329
    %v333 = vsel %vm304, %v327, 0
    %335 = vmatprep.subr.bf16.mxu0 0
    %336 = vmatpush1.bf16.msra.mxu0 %v330
    %337 = vmatprep.subr.bf16.mxu0 0
    %338 = vmatpush1.bf16.msra.mxu0 0
    %339 = vmatprep.subr.bf16.mxu0 0
    %340 = vmatpush1.bf16.msra.mxu0 0
    %341 = vmatprep.subr.bf16.mxu0 0
    %342 = vmatpush1.bf16.msra.mxu0 0
    %343 = vmatprep.subr.bf16.mxu0 0
    %344 = vmatpush1.bf16.msra.mxu0 0
    %345 = vmatprep.subr.bf16.mxu0 0
    %346 = vmatpush1.bf16.msra.mxu0 0
    %347 = vmatprep.subr.bf16.mxu0 0
    %348 = vmatpush1.bf16.msra.mxu0 0
    %349 = vmatprep.subr.bf16.mxu0 0
    %350 = vmatpush1.bf16.msra.mxu0 0
    %351 = vmatprep.subr.bf16.mxu0 0
    %352 = vmatpush1.bf16.msra.mxu0 0
    %353 = vmatprep.subr.bf16.mxu0 0
    %354 = vmatpush1.bf16.msra.mxu0 0
    %355 = vmatprep.subr.bf16.mxu0 0
    %356 = vmatpush1.bf16.msra.mxu0 0
    %357 = vmatprep.subr.bf16.mxu0 0
    %358 = vmatpush1.bf16.msra.mxu0 0
    %359 = vmatprep.subr.bf16.mxu0 0
    %360 = vmatpush1.bf16.msra.mxu0 0
    %361 = vmatprep.subr.bf16.mxu0 0
    %362 = vmatpush1.bf16.msra.mxu0 0
    %363 = vmatprep.subr.bf16.mxu0 0
    %364 = vmatpush1.bf16.msra.mxu0 0
    %365 = vmatprep.subr.bf16.mxu0 0
    %366 = vmatpush1.bf16.msra.mxu0 0
    %367 = vmatprep.mubr.bf16.mxu0 0
    %368 = vmatmul.mubr.bf16.gmra.mrb[0].mxu0 %v333
    %v369 = vpop.f32.mrb[0].mxu0
    %v370 = vadd.f32 0.0, %v369
    %v371 = vpop.f32.mrb[0].mxu0
    %v372 = vpop.f32.mrb[0].mxu0
    %v373 = vadd.f32 0.0, %v372
    %v374 = vpop.f32.mrb[0].mxu0
    %375 = vdwg.mxu0
    %377 = vrot.lane.b32.xlu0 %v254, 96
    %v378 = vpop.permute.xlu0 %377
    %379 = vrot.lane.b32.xlu0 %v253, 96
    %v380 = vpop.permute.xlu0 %379
    %v382 = vsel %vm122, %v378, 0
    %v385 = vsel %vm122, %v380, 0
    %387 = vmatprep.subr.bf16.mxu0 0
    %388 = vmatpush1.bf16.xpose.msra.mxu0 %v385
    %389 = vmatprep.subr.bf16.mxu0 0
    %390 = vmatpush1.bf16.xpose.msra.mxu0 0
    %391 = vmatprep.subr.bf16.mxu0 0
    %392 = vmatpush1.bf16.xpose.msra.mxu0 0
    %393 = vmatprep.subr.bf16.mxu0 0
    %394 = vmatpush1.bf16.xpose.msra.mxu0 0
    %395 = vmatprep.subr.bf16.mxu0 0
    %396 = vmatpush1.bf16.xpose.msra.mxu0 0
    %397 = vmatprep.subr.bf16.mxu0 0
    %398 = vmatpush1.bf16.xpose.msra.mxu0 0
    %399 = vmatprep.subr.bf16.mxu0 0
    %400 = vmatpush1.bf16.xpose.msra.mxu0 0
    %401 = vmatprep.subr.bf16.mxu0 0
    %402 = vmatpush1.bf16.xpose.msra.mxu0 0
    %403 = vmatprep.subr.bf16.mxu0 0
    %404 = vmatpush1.bf16.xpose.msra.mxu0 0
    %405 = vmatprep.subr.bf16.mxu0 0
    %406 = vmatpush1.bf16.xpose.msra.mxu0 0
    %407 = vmatprep.subr.bf16.mxu0 0
    %408 = vmatpush1.bf16.xpose.msra.mxu0 0
    %409 = vmatprep.subr.bf16.mxu0 0
    %410 = vmatpush1.bf16.xpose.msra.mxu0 0
    %411 = vmatprep.subr.bf16.mxu0 0
    %412 = vmatpush1.bf16.xpose.msra.mxu0 0
    %413 = vmatprep.subr.bf16.mxu0 0
    %414 = vmatpush1.bf16.xpose.msra.mxu0 0
    %415 = vmatprep.subr.bf16.mxu0 0
    %416 = vmatpush1.bf16.xpose.msra.mxu0 0
    %417 = vmatprep.subr.bf16.mxu0 0
    %418 = vmatpush1.bf16.xpose.msra.mxu0 0
    %419 = vmatprep.mubr.bf16.mxu0 0
    %420 = vmatmul.mubr.bf16.gmra.mrb[0].mxu0 %v382
    %v421 = vpop.f32.mrb[0].mxu0
    %v422 = vadd.f32 %v255, %v421
    %v423 = vpop.f32.mrb[0].mxu0
    %v424 = vpop.f32.mrb[0].mxu0
    %v425 = vadd.f32 %v256, %v424
    %v426 = vpop.f32.mrb[0].mxu0
    %427 = vdwg.mxu0
    %v428 = vsel %vm304, %v422, -inf
    %429 = vmax.xlane.f32.xlu0 %v428
    %v430 = vpop.xlane.xlu0 %429
    %v431 = vsel %vm304, %v425, -inf
    %432 = vmax.xlane.f32.xlu0 %v431
    %v433 = vpop.xlane.xlu0 %432
    %v434 = vsub.f32 %v422, %v430
    %v435 = vsub.f32 %v425, %v433
    %v436 = vmul.f32 %v434, 1.442695
    %v437 = vpow.pop %v436
    %v438 = vmul.f32 %v435, 1.442695
    %v439 = vpow.pop %v438
    %v440 = vsel %vm304, %v437, 0.0
    %441 = vadd.xlane.f32.xlu0 %v440
    %v442 = vpop.xlane.xlu0 %441
    %v443 = vsel %vm304, %v439, 0.0
    %444 = vadd.xlane.f32.xlu0 %v443
    %v445 = vpop.xlane.xlu0 %444
    %v446 = vrcp.pop %v442
    %v447 = vrcp.pop %v445
    %v448 = vmul.f32 %v437, %v446
    %v449 = vmul.f32 %v439, %v447
    %v450 = vpack.c.bf16 %v449, %v448
    %451 = vrot.lane.b32.xlu0 %v253, 32
    %v452 = vpop.permute.xlu0 %451
    %v455 = vsel %vm304, %v450, 0
    %457 = vmatprep.subr.bf16.mxu0 0
    %458 = vmatpush1.bf16.msra.mxu0 %v452
    %459 = vmatprep.subr.bf16.mxu0 0
    %460 = vmatpush1.bf16.msra.mxu0 0
    %461 = vmatprep.subr.bf16.mxu0 0
    %462 = vmatpush1.bf16.msra.mxu0 0
    %463 = vmatprep.subr.bf16.mxu0 0
    %464 = vmatpush1.bf16.msra.mxu0 0
    %465 = vmatprep.subr.bf16.mxu0 0
    %466 = vmatpush1.bf16.msra.mxu0 0
    %467 = vmatprep.subr.bf16.mxu0 0
    %468 = vmatpush1.bf16.msra.mxu0 0
    %469 = vmatprep.subr.bf16.mxu0 0
    %470 = vmatpush1.bf16.msra.mxu0 0
    %471 = vmatprep.subr.bf16.mxu0 0
    %472 = vmatpush1.bf16.msra.mxu0 0
    %473 = vmatprep.subr.bf16.mxu0 0
    %474 = vmatpush1.bf16.msra.mxu0 0
    %475 = vmatprep.subr.bf16.mxu0 0
    %476 = vmatpush1.bf16.msra.mxu0 0
    %477 = vmatprep.subr.bf16.mxu0 0
    %478 = vmatpush1.bf16.msra.mxu0 0
    %479 = vmatprep.subr.bf16.mxu0 0
    %480 = vmatpush1.bf16.msra.mxu0 0
    %481 = vmatprep.subr.bf16.mxu0 0
    %482 = vmatpush1.bf16.msra.mxu0 0
    %483 = vmatprep.subr.bf16.mxu0 0
    %484 = vmatpush1.bf16.msra.mxu0 0
    %485 = vmatprep.subr.bf16.mxu0 0
    %486 = vmatpush1.bf16.msra.mxu0 0
    %487 = vmatprep.subr.bf16.mxu0 0
    %488 = vmatpush1.bf16.msra.mxu0 0
    %489 = vmatprep.mubr.bf16.mxu0 0
    %490 = vmatmul.mubr.bf16.gmra.mrb[0].mxu0 %v455
    %v491 = vpop.f32.mrb[0].mxu0
    %v492 = vadd.f32 0.0, %v491
    %v493 = vpop.f32.mrb[0].mxu0
    %v494 = vpop.f32.mrb[0].mxu0
    %v495 = vadd.f32 0.0, %v494
    %v496 = vpop.f32.mrb[0].mxu0
    %497 = vdwg.mxu0
    %500 = vrot.lane.b32.xlu0 %v492, 32
    %v501 = vpop.permute.xlu0 %500
    %502 = vrot.lane.b32.xlu0 %v495, 32
    %v503 = vpop.permute.xlu0 %502
    %v506 = vsel %vm122, %v370, %v501
    %v507 = vsel %vm122, %v373, %v503
    %v508 = vpack.c.bf16 %v507, %v506
    %v509 = vld [vmem:[%s5] sm:$0xf]
    %v510 = vld [vmem:[%s5 + $0x4] sm:$0xf]
    %v511 = vld [vmem:[%s5 + $0x8] sm:$0xf]
    %v512 = vld [vmem:[%s5 + $0xc] sm:$0xf]
    %v513 = vld [vmem:[%s5 + $0x10] sm:$0xf]
    %v514 = vld [vmem:[%s5 + $0x14] sm:$0xf]
    %v515 = vld [vmem:[%s5 + $0x18] sm:$0xf]
    %v516 = vld [vmem:[%s5 + $0x1c] sm:$0xf]
    %v517 = vld [vmem:[#allocation7] sm:$0x1]
    %v519 = vlaneseq
    %v520 = vshrl.u32 %v519, 7
    %v521 = vsub.s32 0, %v520
    %v522 = vrot.slane %v517, %v521
    %v532 = vunpack.c.l.b16 %v509
    %v533 = vunpack.c.l.b16 %v510
    %v534 = vunpack.c.l.b16 %v511
    %v535 = vunpack.c.l.b16 %v512
    %v536 = vunpack.c.l.b16 %v513
    %v537 = vunpack.c.l.b16 %v514
    %v538 = vunpack.c.l.b16 %v515
    %v539 = vunpack.c.l.b16 %v516
    %v540 = vpack.c.b16 %v533, %v532
    %v541 = vpack.c.b16 %v535, %v534
    %v542 = vpack.c.b16 %v537, %v536
    %v543 = vpack.c.b16 %v539, %v538
    %vm548 = vcmask 523264
    %v550 = vsel %vm548, %v508, 0
    %552 = vmatprep.subr.bf16.mxu0 0
    %553 = vmatpush1.bf16.msra.mxu0 %v540
    %554 = vmatprep.subr.bf16.mxu0 0
    %555 = vmatpush1.bf16.msra.mxu0 %v541
    %556 = vmatprep.subr.bf16.mxu0 0
    %557 = vmatpush1.bf16.msra.mxu0 %v542
    %558 = vmatprep.subr.bf16.mxu0 0
    %559 = vmatpush1.bf16.msra.mxu0 %v543
    %560 = vmatprep.subr.bf16.mxu0 0
    %561 = vmatpush1.bf16.msra.mxu0 0
    %562 = vmatprep.subr.bf16.mxu0 0
    %563 = vmatpush1.bf16.msra.mxu0 0
    %564 = vmatprep.subr.bf16.mxu0 0
    %565 = vmatpush1.bf16.msra.mxu0 0
    %566 = vmatprep.subr.bf16.mxu0 0
    %567 = vmatpush1.bf16.msra.mxu0 0
    %568 = vmatprep.subr.bf16.mxu0 0
    %569 = vmatpush1.bf16.msra.mxu0 0
    %570 = vmatprep.subr.bf16.mxu0 0
    %571 = vmatpush1.bf16.msra.mxu0 0
    %572 = vmatprep.subr.bf16.mxu0 0
    %573 = vmatpush1.bf16.msra.mxu0 0
    %574 = vmatprep.subr.bf16.mxu0 0
    %575 = vmatpush1.bf16.msra.mxu0 0
    %576 = vmatprep.subr.bf16.mxu0 0
    %577 = vmatpush1.bf16.msra.mxu0 0
    %578 = vmatprep.subr.bf16.mxu0 0
    %579 = vmatpush1.bf16.msra.mxu0 0
    %580 = vmatprep.subr.bf16.mxu0 0
    %581 = vmatpush1.bf16.msra.mxu0 0
    %582 = vmatprep.subr.bf16.mxu0 0
    %583 = vmatpush1.bf16.msra.mxu0 0
    %584 = vmatprep.mubr.bf16.mxu0 0
    %585 = vmatmul.mubr.bf16.gmra.mrb[0].mxu0 %v550
    %v586 = vpop.f32.mrb[0].mxu0
    %v587 = vadd.f32 %v522, %v586
    %v588 = vpop.f32.mrb[0].mxu0
    %v589 = vpop.f32.mrb[0].mxu0
    %v590 = vadd.f32 %v522, %v589
    %v591 = vpop.f32.mrb[0].mxu0
    %592 = vdwg.mxu0
    %v593 = vadd.f32 %v587, %v120
    %v594 = vadd.f32 %v590, %v121
    %v595 = vpack.c.bf16 %v594, %v593
    %v596 = vld [vmem:[#allocation8] sm:$0xf]
    %v597 = vld [vmem:[#allocation8 + $0x4] sm:$0xf]
    %v598 = vld [vmem:[#allocation8 + $0x8] sm:$0xf]
    %v599 = vld [vmem:[#allocation8 + $0xc] sm:$0xf]
    %v600 = vld [vmem:[#allocation10] sm:$0x1]
    %v602 = vlaneseq
    %v603 = vshrl.u32 %v602, 7
    %v604 = vsub.s32 0, %v603
    %v605 = vrot.slane %v600, %v604
    %v611 = vunpack.c.l.b16 %v596
    %v612 = vunpack.c.l.b16 %v597
    %v613 = vunpack.c.l.b16 %v598
    %v614 = vunpack.c.l.b16 %v599
    %v615 = vpack.c.b16 %v612, %v611
    %v616 = vpack.c.b16 %v614, %v613
    %v620 = vsel %vm122, %v595, 0
    %622 = vmatprep.subr.bf16.mxu0 0
    %623 = vmatpush1.bf16.msra.mxu0 %v615
    %624 = vmatprep.subr.bf16.mxu0 0
    %625 = vmatpush1.bf16.msra.mxu0 %v616
    %626 = vmatprep.subr.bf16.mxu0 0
    %627 = vmatpush1.bf16.msra.mxu0 0
    %628 = vmatprep.subr.bf16.mxu0 0
    %629 = vmatpush1.bf16.msra.mxu0 0
    %630 = vmatprep.subr.bf16.mxu0 0
    %631 = vmatpush1.bf16.msra.mxu0 0
    %632 = vmatprep.subr.bf16.mxu0 0
    %633 = vmatpush1.bf16.msra.mxu0 0
    %634 = vmatprep.subr.bf16.mxu0 0
    %635 = vmatpush1.bf16.msra.mxu0 0
    %636 = vmatprep.subr.bf16.mxu0 0
    %637 = vmatpush1.bf16.msra.mxu0 0
    %638 = vmatprep.subr.bf16.mxu0 0
    %639 = vmatpush1.bf16.msra.mxu0 0
    %640 = vmatprep.subr.bf16.mxu0 0
    %641 = vmatpush1.bf16.msra.mxu0 0
    %642 = vmatprep.subr.bf16.mxu0 0
    %643 = vmatpush1.bf16.msra.mxu0 0
    %644 = vmatprep.subr.bf16.mxu0 0
    %645 = vmatpush1.bf16.msra.mxu0 0
    %646 = vmatprep.subr.bf16.mxu0 0
    %647 = vmatpush1.bf16.msra.mxu0 0
    %648 = vmatprep.subr.bf16.mxu0 0
    %649 = vmatpush1.bf16.msra.mxu0 0
    %650 = vmatprep.subr.bf16.mxu0 0
    %651 = vmatpush1.bf16.msra.mxu0 0
    %652 = vmatprep.subr.bf16.mxu0 0
    %653 = vmatpush1.bf16.msra.mxu0 0
    %654 = vmatprep.mubr.bf16.mxu0 0
    %655 = vmatmul.mubr.bf16.gmra.mrb[0].mxu0 %v620
    %v656 = vpop.f32.mrb[0].mxu0
    %v657 = vadd.f32 %v605, %v656
    %v658 = vpop.f32.mrb[0].mxu0
    %v659 = vpop.f32.mrb[0].mxu0
    %v660 = vadd.f32 %v605, %v659
    %v661 = vpop.f32.mrb[0].mxu0
    %662 = vdwg.mxu0
    %v663 = vmul.f32 %v657, 0.5
    %v664 = vmul.f32 %v660, 0.5
    %v665 = vmul.f32 %v657, %v657
    %v666 = vmul.f32 %v660, %v660
    %v667 = vmul.f32 %v657, %v665
    %v668 = vmul.f32 %v660, %v666
    %v669 = vmul.f32 %v667, 0.044715
    %v670 = vmul.f32 %v668, 0.044715
    %v671 = vadd.f32 %v657, %v669
    %v672 = vadd.f32 %v660, %v670
    %v673 = vmul.f32 %v671, 0.7978846
    %v674 = vmul.f32 %v672, 0.7978846
    %v675 = vtanh.pop %v673
    %v676 = vtanh.pop %v674
    %v677 = vadd.f32 %v675, 1.0
    %v678 = vadd.f32 %v676, 1.0
    %v679 = vmul.f32 %v663, %v677
    %v680 = vmul.f32 %v664, %v678
    %v681 = vpack.c.bf16 %v680, %v679
    %v682 = vld [vmem:[%s9] sm:$0xf]
    %v683 = vld [vmem:[%s9 + $0x4] sm:$0xf]
    %v684 = vld [vmem:[%s9 + $0x8] sm:$0xf]
    %v685 = vld [vmem:[%s9 + $0xc] sm:$0xf]
    %v686 = vld [vmem:[%s10] sm:$0x1]
    %v688 = vlaneseq
    %v689 = vshrl.u32 %v688, 7
    %v690 = vsub.s32 0, %v689
    %v691 = vrot.slane %v686, %v690
    %v697 = vunpack.c.l.b16 %v682
    %v698 = vunpack.c.l.b16 %v683
    %v699 = vunpack.c.l.b16 %v684
    %v700 = vunpack.c.l.b16 %v685
    %v701 = vpack.c.b16 %v698, %v697
    %v702 = vpack.c.b16 %v700, %v699
    %v706 = vsel %vm122, %v681, 0
    %708 = vmatprep.subr.bf16.mxu0 0
    %709 = vmatpush1.bf16.msra.mxu0 %v701
    %710 = vmatprep.subr.bf16.mxu0 0
    %711 = vmatpush1.bf16.msra.mxu0 %v702
    %712 = vmatprep.subr.bf16.mxu0 0
    %713 = vmatpush1.bf16.msra.mxu0 0
    %714 = vmatprep.subr.bf16.mxu0 0
    %715 = vmatpush1.bf16.msra.mxu0 0
    %716 = vmatprep.subr.bf16.mxu0 0
    %717 = vmatpush1.bf16.msra.mxu0 0
    %718 = vmatprep.subr.bf16.mxu0 0
    %719 = vmatpush1.bf16.msra.mxu0 0
    %720 = vmatprep.subr.bf16.mxu0 0
    %721 = vmatpush1.bf16.msra.mxu0 0
    %722 = vmatprep.subr.bf16.mxu0 0
    %723 = vmatpush1.bf16.msra.mxu0 0
    %724 = vmatprep.subr.bf16.mxu0 0
    %725 = vmatpush1.bf16.msra.mxu0 0
    %726 = vmatprep.subr.bf16.mxu0 0
    %727 = vmatpush1.bf16.msra.mxu0 0
    %728 = vmatprep.subr.bf16.mxu0 0
    %729 = vmatpush1.bf16.msra.mxu0 0
    %730 = vmatprep.subr.bf16.mxu0 0
    %731 = vmatpush1.bf16.msra.mxu0 0
    %732 = vmatprep.subr.bf16.mxu0 0
    %733 = vmatpush1.bf16.msra.mxu0 0
    %734 = vmatprep.subr.bf16.mxu0 0
    %735 = vmatpush1.bf16.msra.mxu0 0
    %736 = vmatprep.subr.bf16.mxu0 0
    %737 = vmatpush1.bf16.msra.mxu0 0
    %738 = vmatprep.subr.bf16.mxu0 0
    %739 = vmatpush1.bf16.msra.mxu0 0
    %740 = vmatprep.mubr.bf16.mxu0 0
    %741 = vmatmul.mubr.bf16.gmra.mrb[0].mxu0 %v706
    %v742 = vpop.f32.mrb[0].mxu0
    %v743 = vadd.f32 %v691, %v742
    %v744 = vpop.f32.mrb[0].mxu0
    %v745 = vpop.f32.mrb[0].mxu0
    %v746 = vadd.f32 %v691, %v745
    %v747 = vpop.f32.mrb[0].mxu0
    %748 = vdwg.mxu0
    %v749 = vadd.f32 %v743, %v593
    %v750 = vadd.f32 %v746, %v594
    %751 = vst.msk [vmem:[#allocation13] sm:$0xff] %vm122, %v749
    %752 = vst.msk [vmem:[#allocation13 + $0x8] sm:$0xff] %vm122, %v750
    // Predicated region
    $region74: #{tpu_custom_call.1} parent=1 // pred_check
      _
    $region75: #{tpu_custom_call.1} parent=1 // pred_check_branch
      %754 = sbr.rel (0) target = $region77
    $region76: #{tpu_custom_call.1} parent=1 // pred_region
      %s756 = ssub.s32 256, 256
      %757 = vsyncadd [#allocation4], %s756
      %s758 = sshll.u32 [#allocation13], 4
      %s759 = int_to_ptr.vmem [resolvable:$true] %s758
      %764 = dma.vmem_to_hbm [thread:$0]  %s759, 256, %s12, [#allocation4], 128, 128, 8
    $region77: #{tpu_custom_call.1} parent=1 // pred_fallthru
      _
    // Predicated region
    $region78: #{tpu_custom_call.1} parent=1 // pred_check
      _
    $region79: #{tpu_custom_call.1} parent=1 // pred_check_branch
      %766 = sbr.rel (0) target = $region81
    $region80: #{tpu_custom_call.1} parent=1 // pred_region
      %s768 = ssub.s32 256, 256
      %769 = vsyncadd [#allocation15], %s768
      %s770 = sshll.u32 [#allocation14], 4
      %s771 = int_to_ptr.vmem [resolvable:$true] %s770
      %776 = dma.vmem_to_hbm [thread:$0]  %s771, 256, %s13, [#allocation15], 128, 128, 8
    $region81: #{tpu_custom_call.1} parent=1 // pred_fallthru
      _
    // Predicated region
    $region82: #{tpu_custom_call.1} parent=1 // pred_check
      _
    $region83: #{tpu_custom_call.1} parent=1 // pred_check_branch
      %778 = sbr.rel (0) target = $region85
    $region84: #{tpu_custom_call.1} parent=1 // pred_region
      %779 = dma.done [#allocation4], 256
    $region85: #{tpu_custom_call.1} parent=1 // pred_fallthru
      _
    // Predicated region
    $region86: #{tpu_custom_call.1} parent=1 // pred_check
      _
    $region87: #{tpu_custom_call.1} parent=1 // pred_check_branch
      %781 = sbr.rel (0) target = $region89
    $region88: #{tpu_custom_call.1} parent=1 // pred_region
      %782 = dma.done [#allocation15], 256
    $region89: #{tpu_custom_call.1} parent=1 // pred_fallthru
      _
    %783 = vsyncpa [#allocation3], 1
    %784 = vsyncpa [#allocation6], 1
    %785 = vsyncpa [#allocation9], 1
    %786 = vsyncpa [#allocation12], 1
    %787 = vsyncpa [#allocation4], 1
    %788 = vsyncpa [#allocation15], 1

</llo_original>
